<compile_context>
chip_gen: v6e
topology: v6e:2x2x1
jax: 0.10.0
libtpu: 0.0.40
codegen_flags: <defaults>
</compile_context>

<pallas_src>
import jax
import jax.numpy as jnp
from jax import lax
from jax.experimental import pallas as pl
from jax.experimental.pallas import tpu as pltpu

C_TRUE = (8, 16, 32)            # true channel widths of the synthetic VGG layers
LANE = 512                      # lane width for the flat MSE reduction
VMEM_LIMIT = 48 * 1024 * 1024   # explicit scoped-VMEM budget (fits v7x's 64 MiB)
CONV_LANE_CAP = 2048            # spatial lane-tile cap for the conv GEMM
LOSS_LANE_CAP = 4096            # spatial lane-tile cap for the loss reductions


def _lane_tile(n, cap):
    """Largest multiple of 128 that divides n and is <= cap, else full extent.

    # TODO(synk): spatial extents with no multiple-of-128 divisor fall back to
    # a full-extent lane block; very large non-power-of-two resolutions should
    # be zero-padded to a multiple of 128 instead.
    """
    if n <= 128 or n % 128 != 0:
        return n
    t = min(cap, n)
    t -= t % 128
    while t >= 128:
        if n % t == 0:
            return t
        t -= 128
    return n


def _split2(nblk):
    """2-way parallel split of a block count (feeds the 2nd v7x TensorCore)."""
    return 2 if (nblk >= 2 and nblk % 2 == 0) else 1


# ----------------------------------------------------------------------------
# MSE (sum of squared differences)
# ----------------------------------------------------------------------------

def _ssd_kernel(a_ref, b_ref, o_ref):
    @pl.when(pl.program_id(1) == 0)
    def _():
        o_ref[...] = jnp.zeros_like(o_ref)

    d = a_ref[...] - b_ref[...]
    d2 = d * d
    # per-lane partial sums; the single cross-lane reduce happens in the wrapper
    o_ref[...] += jnp.sum(d2.reshape(-1, 8, d2.shape[-1]), axis=0)


def sum_sq_diff(a, b):
    """sum((a-b)^2): 2-way-parallel row grid, per-lane f32 partial outputs."""
    a = a.reshape(-1).astype(jnp.float32)
    b = b.reshape(-1).astype(jnp.float32)
    n = a.shape[0]
    P = 2
    rows = pl.cdiv(n, LANE)
    tm = min(512, ((pl.cdiv(rows, P) + 7) // 8) * 8)
    rows_p = pl.cdiv(rows, P * tm) * (P * tm)
    pad = rows_p * LANE - n
    if pad:                                   # zero padding contributes 0
        a = jnp.pad(a, (0, pad))
        b = jnp.pad(b, (0, pad))
    a = a.reshape(rows_p, LANE)
    b = b.reshape(rows_p, LANE)
    npb = rows_p // (P * tm)
    out = pl.pallas_call(
        _ssd_kernel,
        out_shape=jax.ShapeDtypeStruct((P, 8, LANE), jnp.float32),
        grid=(P, npb),
        in_specs=[pl.BlockSpec((tm, LANE), lambda p, i: (p * npb + i, 0)),
                  pl.BlockSpec((tm, LANE), lambda p, i: (p * npb + i, 0))],
        out_specs=pl.BlockSpec((None, 8, LANE), lambda p, i: (p, 0, 0)),
        compiler_params=pltpu.CompilerParams(
            dimension_semantics=("parallel", "arbitrary"),
            vmem_limit_bytes=VMEM_LIMIT),
    )(a, b)
    return jnp.sum(out)


def mse(a, b):
    return sum_sq_diff(a, b) / a.size


# ----------------------------------------------------------------------------
# Conv (channel-major GEMM + bias + ReLU)
# ----------------------------------------------------------------------------

def _conv_kernel(w_ref, b_ref, p_ref, o_ref):
    acc = jnp.dot(w_ref[...], p_ref[...], preferred_element_type=jnp.float32)
    o_ref[...] = jnp.maximum(acc + b_ref[...], 0.0).astype(o_ref.dtype)


def conv_gemm_relu(patches, w, b):
    """patches (B, Kp, S) bf16, w (c, Kp) bf16, b (c, 1) f32 -> (B, c, S) bf16."""
    B, Kp, S = patches.shape
    c = w.shape[0]
    tk = _lane_tile(S, CONV_LANE_CAP)
    return pl.pallas_call(
        _conv_kernel,
        out_shape=jax.ShapeDtypeStruct((B, c, S), jnp.bfloat16),
        grid=(B, S // tk),
        in_specs=[pl.BlockSpec((c, Kp), lambda nb, j: (0, 0)),
                  pl.BlockSpec((c, 1), lambda nb, j: (0, 0)),
                  pl.BlockSpec((None, Kp, tk), lambda nb, j: (nb, 0, j))],
        out_specs=pl.BlockSpec((None, c, tk), lambda nb, j: (nb, 0, j)),
        compiler_params=pltpu.CompilerParams(
            dimension_semantics=("parallel", "parallel"),
            vmem_limit_bytes=VMEM_LIMIT),
    )(w, b, patches)


# ----------------------------------------------------------------------------
# LPIPS layer distance
# ----------------------------------------------------------------------------

def _lpips_kernel(g_ref, r_ref, w_ref, o_ref):
    @pl.when(pl.program_id(2) == 0)
    def _():
        o_ref[...] = jnp.zeros_like(o_ref)

    g = g_ref[...].astype(jnp.float32)
    r = r_ref[...].astype(jnp.float32)
    gn = g * lax.rsqrt(jnp.sum(g * g, axis=0, keepdims=True) + 1e-10)
    rn = r * lax.rsqrt(jnp.sum(r * r, axis=0, keepdims=True) + 1e-10)
    d = gn - rn
    o_ref[...] += d * d * w_ref[...]          # per-lane partials, no reduce here


def lpips_layer_dist(feats, n, gen_off, ref_off, lin_w, hw):
    """feats (B, c, hw) stacked bf16 streams; returns sum_n mean_pos sum_c w_c d^2."""
    _, c, S = feats.shape
    tk = _lane_tile(S, LOSS_LANE_CAP)
    nblk = S // tk
    P = _split2(nblk)
    bpp = nblk // P
    out = pl.pallas_call(
        _lpips_kernel,
        out_shape=jax.ShapeDtypeStruct((n, P, c, tk), jnp.float32),
        grid=(n, P, bpp),
        in_specs=[
            pl.BlockSpec((None, c, tk),
                         lambda i, p, j: (gen_off + i, 0, p * bpp + j)),
            pl.BlockSpec((None, c, tk),
                         lambda i, p, j: (ref_off + i, 0, p * bpp + j)),
            pl.BlockSpec((c, 1), lambda i, p, j: (0, 0)),
        ],
        out_specs=pl.BlockSpec((None, None, c, tk),
                               lambda i, p, j: (i, p, 0, 0)),
        compiler_params=pltpu.CompilerParams(
            dimension_semantics=("parallel", "parallel", "arbitrary"),
            vmem_limit_bytes=VMEM_LIMIT),
    )(feats, feats, lin_w)
    return jnp.sum(out) / hw


# ----------------------------------------------------------------------------
# Style (masked Gram) layer distance
# ----------------------------------------------------------------------------

def _style_kernel(g_ref, r_ref, m_ref, o_ref):
    @pl.when(pl.program_id(2) == 0)
    def _():
        o_ref[...] = jnp.zeros_like(o_ref)

    m = m_ref[...]                                  # (1, tk) bf16 0/1 mask
    fg = g_ref[...] * m                             # bf16 MXU operands
    fr = r_ref[...] * m
    dn = (((1,), (1,)), ((), ()))                   # Gram = F @ F^T (contract lanes)
    gg = lax.dot_general(fg, fg, dn, preferred_element_type=jnp.float32)
    gr = lax.dot_general(fr, fr, dn, preferred_element_type=jnp.float32)
    o_ref[...] += gg - gr                           # linear in the partial Grams


def style_layer_dist(feats, n, g_off, r_off, mask_flat):
    """feats (B, c, hw) bf16, mask_flat (n, 1, hw) bf16.

    Returns sum_i || Gram(fg_i*m_i) - Gram(fr_i*m_i) ||_F^2 / (n*c*c).
    """
    _, c, S = feats.shape
    tk = _lane_tile(S, LOSS_LANE_CAP)
    nblk = S // tk
    P = _split2(nblk)
    bpp = nblk // P
    out = pl.pallas_call(
        _style_kernel,
        out_shape=jax.ShapeDtypeStruct((n, P, c, c), jnp.float32),
        grid=(n, P, bpp),
        in_specs=[
            pl.BlockSpec((None, c, tk),
                         lambda i, p, j: (g_off + i, 0, p * bpp + j)),
            pl.BlockSpec((None, c, tk),
                         lambda i, p, j: (r_off + i, 0, p * bpp + j)),
            pl.BlockSpec((None, 1, tk),
                         lambda i, p, j: (i, 0, p * bpp + j)),
        ],
        out_specs=pl.BlockSpec((None, None, c, c),
                               lambda i, p, j: (i, p, 0, 0)),
        compiler_params=pltpu.CompilerParams(
            dimension_semantics=("parallel", "parallel", "arbitrary"),
            vmem_limit_bytes=VMEM_LIMIT),
    )(feats, feats, mask_flat)
    gram_diff = jnp.sum(out, axis=1)                # combine split partial Grams
    return jnp.sum(gram_diff * gram_diff) / (n * c * c)


# ----------------------------------------------------------------------------
# XLA glue: channel-major im2col, max pool, synthetic VGG
# ----------------------------------------------------------------------------

def im2col3x3_cm(x, kp_pad):
    """x (B, C, H, W) -> channel-major 3x3 'same' patches (B, kp_pad, H*W).

    # TODO(synk): im2col could be fused into the conv kernel (9 shifted
    # accumulating matmuls) to cut conv-input HBM traffic ~9x; kept as XLA glue.
    """
    B, C, H, W = x.shape
    xp = jnp.pad(x, ((0, 0), (0, 0), (1, 1), (1, 1)))
    cols = [xp[:, :, di:di + H, dj:dj + W].reshape(B, C, H * W)
            for di in range(3) for dj in range(3)]
    extra = kp_pad - 9 * C
    if extra:                                       # zero K-padding: exact
        cols.append(jnp.zeros((B, extra, H * W), x.dtype))
    return jnp.concatenate(cols, axis=1)


def maxpool2(x):
    """2x2 max pool over the trailing spatial dims of (B, C, H, W)."""
    B, C, H, W = x.shape
    return jnp.max(x.reshape(B, C, H // 2, 2, W // 2, 2), axis=(3, 5))


class MiniVGG:
    """Synthetic stand-in for the VGG backbone of lpips / StyleLoss.

    Weights are (c, 9*Cin_pad) channel-major GEMM matrices; the contraction
    dim is zero-padded to a multiple of 16 so bf16 matmuls stay sublane
    aligned (padding contributes exactly zero).
    """

    def __init__(self, key):
        k = jax.random.split(key, 6)
        cins = (3,) + C_TRUE[:-1]
        self.ws, self.bs, self.kp_pads = [], [], []
        for i, (cin, cout) in enumerate(zip(cins, C_TRUE)):
            kp = 9 * cin
            kp_pad = ((kp + 15) // 16) * 16
            w = jax.random.normal(k[2 * i], (cout, kp), jnp.float32) * 0.1
            b = jax.random.normal(k[2 * i + 1], (cout, 1), jnp.float32) * 0.01
            wp = jnp.zeros((cout, kp_pad), jnp.float32).at[:, :kp].set(w)
            self.ws.append(wp.astype(jnp.bfloat16))
            self.bs.append(b)
            self.kp_pads.append(kp_pad)

    def features(self, x_nchw):
        """x (B, 3, H, W) -> list of (B, c, h*w) bf16 feature maps + (h, w) dims."""
        x = x_nchw.astype(jnp.bfloat16)
        feats, dims = [], []
        for li, (w, b, c) in enumerate(zip(self.ws, self.bs, C_TRUE)):
            B, _, H, W = x.shape
            patches = im2col3x3_cm(x, self.kp_pads[li])     # (B, Kp, H*W)
            f = conv_gemm_relu(patches, w, b)               # (B, c, H*W)
            feats.append(f)
            dims.append((H, W))
            if li < len(self.ws) - 1:
                x = maxpool2(f.reshape(B, c, H, W))
        return feats, dims


# ----------------------------------------------------------------------------
# EmbeddingLossBuilder (JAX / Pallas)
# ----------------------------------------------------------------------------

class Opt:
    l2_lambda = 1.0
    percept_lambda = 0.8
    sp_hair_lambda = 1.5
    device = "tpu"


class EmbeddingLossBuilder:
    def __init__(self, opt):
        self.opt = opt
        self.parsed_loss = [[opt.l2_lambda, "l2"],
                            [opt.percept_lambda, "percep"],
                            [opt.sp_hair_lambda, "sp_hair"]]
        key = jax.random.PRNGKey(0)
        k_vgg, k_lin = jax.random.split(key)
        self.vgg = MiniVGG(k_vgg)
        # TODO(synk): pretrained lpips net-lin / VGG16 weights replaced by
        # deterministic synthetic parameters (no checkpoint load).
        kl = jax.random.split(k_lin, 3)
        self.lin_w = [jnp.abs(jax.random.normal(kl[i], (c, 1), jnp.float32))
                      for i, c in enumerate(C_TRUE)]

    # --- individual losses ---------------------------------------------------
    def _loss_l2(self, gen_im, ref_im):
        return mse(gen_im, ref_im)

    def _loss_lpips_from_feats(self, feats, dims, N):
        total = jnp.float32(0.0)
        for f, (h, w), lw in zip(feats, dims, self.lin_w):
            total = total + lpips_layer_dist(f, N, 0, N, lw, h * w)
        return total

    def _loss_sp_hair_from_feats(self, feats, dims, N, sp_mask):
        m = sp_mask.astype(jnp.float32)                     # (N, 1, h, w)
        total = jnp.float32(0.0)
        for li, (f, (h, w)) in enumerate(zip(feats, dims)):
            if li > 0:
                m = maxpool2(m)
            mf = m.reshape(N, 1, h * w).astype(jnp.bfloat16)
            total = total + style_layer_dist(f, N, 2 * N, 3 * N, mf)
        return total

    # --- forward --------------------------------------------------------------
    def forward(self, ref_im_H, ref_im_L, gen_im_H, gen_im_L, sp_mask=None):
        weights = {lt: w for w, lt in self.parsed_loss}
        need_style = (weights.get("sp_hair", 0) != 0) and (sp_mask is not None)

        # Single stacked feature pass: [gen, ref] (+ [gen*mask, ref*mask]).
        N = gen_im_L.shape[0]
        stack = [gen_im_L, ref_im_L]
        if need_style:
            stack += [gen_im_L * sp_mask, ref_im_L * sp_mask]
        feats, dims = self.vgg.features(jnp.concatenate(stack, axis=0))

        loss = jnp.float32(0.0)
        losses = {}
        for weight, loss_type in self.parsed_loss:
            if loss_type == "l2":
                tmp = self._loss_l2(gen_im_H, ref_im_H)
            elif loss_type == "percep":
                tmp = self._loss_lpips_from_feats(feats, dims, N)
            elif loss_type == "sp_hair":
                if weight == 0 or sp_mask is None:
                    continue
                tmp = self._loss_sp_hair_from_feats(feats, dims, N, sp_mask)
            losses[loss_type] = tmp
            loss = loss + weight * tmp
        return loss, losses

    __call__ = forward


# ----------------------------------------------------------------------------
if __name__ == "__main__":
    key = jax.random.PRNGKey(0)
    k = jax.random.split(key, 5)
    # NCHW inputs (PyTorch convention)
    ref_im_H = jax.random.normal(k[0], (2, 3, 32, 32), jnp.float32)
    gen_im_H = jax.random.normal(k[1], (2, 3, 32, 32), jnp.float32)
    ref_im_L = jax.random.normal(k[2], (2, 3, 16, 16), jnp.float32)
    gen_im_L = jax.random.normal(k[3], (2, 3, 16, 16), jnp.float32)
    sp_mask = (jax.random.uniform(k[4], (2, 1, 16, 16), jnp.float32) > 0.5
               ).astype(jnp.float32)

    builder = EmbeddingLossBuilder(Opt())
    loss, losses = builder(ref_im_H, ref_im_L, gen_im_H, gen_im_L, sp_mask)
    loss = jax.block_until_ready(loss)
    for v in losses.values():
        jax.block_until_ready(v)
    assert jnp.isfinite(loss)
    print("KERNEL_OK")
</pallas_src>

<mosaic_0001>
module attributes {stable_mosaic.version = 11 : i64} {
  func.func @_conv_kernel(%arg0: i32, %arg1: i32, %arg2: memref<8x32xbf16, #tpu.memory_space<vmem>>, %arg3: memref<8x1xf32, #tpu.memory_space<vmem>>, %arg4: memref<1x32x256xbf16, #tpu.memory_space<vmem>>, %arg5: memref<1x8x256xbf16, #tpu.memory_space<vmem>>) attributes {dimension_semantics = [#tpu.dimension_semantics<parallel>, #tpu.dimension_semantics<parallel>], iteration_bounds = array<i64: 8, 1>, scalar_prefetch = 0 : i64, scratch_operands = 0 : i64, tpu.core_type = #tpu.core_type<tc>, window_params = [{pipeline_mode = #tpu.pipeline_mode<synchronous>, transform_indices = @transform_0, window_bounds = array<i64: 8, 32>}, {pipeline_mode = #tpu.pipeline_mode<synchronous>, transform_indices = @transform_1, window_bounds = array<i64: 8, 1>}, {transform_indices = @transform_2, window_bounds = array<i64: 1, 32, 256>}, {transform_indices = @transform_3, window_bounds = array<i64: 1, 8, 256>}]} {
    %c0 = arith.constant 0 : index
    %c0_0 = arith.constant 0 : index
    %0 = vector.load %arg2[%c0, %c0_0] : memref<8x32xbf16, #tpu.memory_space<vmem>>, vector<8x32xbf16>
    %c0_1 = arith.constant 0 : index
    %c0_2 = arith.constant 0 : index
    %c0_3 = arith.constant 0 : index
    %1 = vector.load %arg4[%c0_1, %c0_2, %c0_3] : memref<1x32x256xbf16, #tpu.memory_space<vmem>>, vector<1x32x256xbf16>
    %2 = vector.shape_cast %1 : vector<1x32x256xbf16> to vector<32x256xbf16>
    %cst = arith.constant dense<0.000000e+00> : vector<8x256xf32>
    %3 = tpu.matmul %0, %2, %cst {dimension_numbers = #tpu.dot_dimension_numbers<[1], [0], [0], [1], [0, 0, 1, 1], [], []>} : vector<8x32xbf16>, vector<32x256xbf16>, vector<8x256xf32> -> vector<8x256xf32>
    %c0_4 = arith.constant 0 : index
    %c0_5 = arith.constant 0 : index
    %4 = vector.load %arg3[%c0_4, %c0_5] : memref<8x1xf32, #tpu.memory_space<vmem>>, vector<8x1xf32>
    %5 = vector.broadcast %4 : vector<8x1xf32> to vector<8x256xf32>
    %6 = arith.addf %3, %5 : vector<8x256xf32>
    %cst_6 = arith.constant 0.000000e+00 : f32
    %7 = vector.broadcast %cst_6 : f32 to vector<8x256xf32>
    %8 = arith.maximumf %6, %7 : vector<8x256xf32>
    %9 = arith.truncf %8 : vector<8x256xf32> to vector<8x256xbf16>
    %c0_7 = arith.constant 0 : index
    %c0_8 = arith.constant 0 : index
    %c0_9 = arith.constant 0 : index
    %10 = vector.load %arg5[%c0_7, %c0_8, %c0_9] : memref<1x8x256xbf16, #tpu.memory_space<vmem>>, vector<1x8x256xbf16>
    %11 = vector.shape_cast %10 : vector<1x8x256xbf16> to vector<8x256xbf16>
    %12 = vector.shape_cast %9 : vector<8x256xbf16> to vector<1x8x256xbf16>
    tpu.vector_store %arg5[%c0_7, %c0_8, %c0_9], %12 {strides = array<i32>} : memref<1x8x256xbf16, #tpu.memory_space<vmem>>, vector<1x8x256xbf16>,
    return
  }
  func.func @transform_0(%arg0: i32, %arg1: i32) -> (i32, i32) {
    %c0_i32 = arith.constant 0 : i32
    %c0_i32_0 = arith.constant 0 : i32
    %c0_i32_1 = arith.constant 0 : i32
    return %c0_i32, %c0_i32_0 : i32, i32
  }
  func.func @transform_1(%arg0: i32, %arg1: i32) -> (i32, i32) {
    %c0_i32 = arith.constant 0 : i32
    %c0_i32_0 = arith.constant 0 : i32
    %c0_i32_1 = arith.constant 0 : i32
    return %c0_i32, %c0_i32_0 : i32, i32
  }
  func.func @transform_2(%arg0: i32, %arg1: i32) -> (i32, i32, i32) {
    %c0_i32 = arith.constant 0 : i32
    %c0_i32_0 = arith.constant 0 : i32
    return %arg0, %c0_i32, %arg1 : i32, i32, i32
  }
  func.func @transform_3(%arg0: i32, %arg1: i32) -> (i32, i32, i32) {
    %c0_i32 = arith.constant 0 : i32
    %c0_i32_0 = arith.constant 0 : i32
    return %arg0, %c0_i32, %arg1 : i32, i32, i32
  }
}

</mosaic_0001>

<llo_original>
// kernel: tpu_custom_call.1
$region0: #{tpu_custom_call.1}
  #allocation0 [shape = 'u32[]', space=smem, size = 0x4, offset = 0x4, fixed_abs, tag = 'smem constant byte address 0x4 - core index']
  #allocation1 [shape = 'u32[144,128]{1,0:T(1,128)}', space=vmem, size = 0x12000, scoped, tag = 'internal scratch']
  %s0 = inlined_call_operand.vmem [shape: bf16[8,32], index: 0, kind: input, shape index: {}]
  %s1 = inlined_call_operand.vmem [shape: f32[8,1], index: 1, kind: input, shape index: {}]
  %s2 = inlined_call_operand.hbm [shape: bf16[8,32,256], index: 2, kind: input, shape index: {}]
  %s3 = inlined_call_operand.hbm [shape: bf16[8,8,256], index: 3, kind: output, shape index: {}]
  %s4 = sld [smem:[#allocation0]]
  $region49: #{tpu_custom_call.1} parent=0
    _
  %s6 = ssub.s32 1, %s4
  %s7 = scalar_select 0, %s6, %s4
  $region1: #{tpu_custom_call.1} parent=0
    #allocation2 [shape = 'u8[32768]{0}', space=vmem, size = 0x8000, scoped, tag = 'input window, operand 2']
    #allocation3 [shape = 's32[2]{0}', space=sflag, size = 0x8, scoped, tag = 'scoped memory for tpu_custom_call.1']
    #allocation4 [shape = 's32[2]{0}', space=sflag, size = 0x8, scoped, tag = 'scoped memory for tpu_custom_call.1']
    #allocation5 [shape = 'u8[8192]{0}', space=vmem, size = 0x2000, scoped, tag = 'output window, operand 0']
    %8 = vsyncpa [#allocation3], 0
    %s9 = scalar_lea.sflag [#allocation3], 1
    %10 = vsyncpa %s9, 0
    %11 = vsyncpa [#allocation4], 0
    %s12 = scalar_lea.sflag [#allocation4], 1
    %13 = vsyncpa %s12, 0
    loop: start=0, step=1, limit=10
    $region2: #{tpu_custom_call.1} parent=1 // loop_pre_header
      _
    $region3: #{tpu_custom_call.1} parent=1 // loop_header
      %s15 = sphi 0, %s19
      %p16 = scmp.ge.s32.totalorder %s15, 10
      %s22 = sphi 0, %s34
      %s23 = sphi 0, %s30
      %s24 = sphi 0, %s22
      %s25 = sphi 0, %s23
      %s26 = sphi 0, %s24
      %s27 = sphi 0, %s25
      %s35 = sphi 0, %s35
      %s37 = sphi 0, %s35
      %s38 = sphi 0, %s37
      %s52 = sphi 0, %s38
      %s56 = sphi 0, %s56
      %s58 = sphi 0, %s56
      %s59 = sphi 0, %s58
      %s73 = sphi 0, %s59
      %s81 = sphi 0, %s83
      %s84 = sphi 0, %s81
      %s85 = sphi 0, %s84
      %s101 = sphi 0, %s85
      %s109 = sphi 0, %s111
      %s112 = sphi 0, %s109
      %s113 = sphi 0, %s112
      %s129 = sphi 0, %s113
    $region4: #{tpu_custom_call.1} parent=1 // loop_header_branch
      %18 = sbr.rel (%p16) target = $region8
    $region5: #{tpu_custom_call.1} parent=1 // loop_body
      %s20 = ssub.s32 %s15, 1
      %s21 = ssub.s32 %s15, 2
      %s28 = sadd.s32 1, %s23
      %p29 = scmp.ge.s32.totalorder %s28, 1
      %s30 = scalar_select %p29, 0, %s28
      %s31 = sadd.s32 1, %s22
      %s32 = scalar_select %p29, %s31, %s22
      %p33 = scmp.ge.s32.totalorder %s32, 8
      %s34 = scalar_select %p33, 0, %s32
      %s36 = sadd.s32 %s35, 1
      %p39 = scmp.eq.s32.totalorder %s15, 7
      %p40 = scmp.ne.s32.totalorder %s35, %s37
      %p41 = scmp.eq.s32.totalorder %s15, 0
      %p42 = por %p40, %p41
      %p43 = scmp.ne.s32.totalorder %s35, %s37
      %p44 = scmp.eq.s32.totalorder %s20, 7
      %p45 = por %p43, %p44
      %p46 = scmp.ne.s32.totalorder %s37, %s38
      %p47 = scmp.eq.s32.totalorder %s20, 0
      %p48 = por %p46, %p47
      %p49 = scmp.ne.s32.totalorder %s37, %s38
      %p50 = scmp.eq.s32.totalorder %s21, 7
      %p51 = por %p49, %p50
      %p53 = scmp.ne.s32.totalorder %s38, %s52
      %p54 = scmp.eq.s32.totalorder %s21, 0
      %p55 = por %p53, %p54
      %s57 = sadd.s32 %s56, 1
      %p60 = scmp.eq.s32.totalorder %s15, 7
      %p61 = scmp.ne.s32.totalorder %s56, %s58
      %p62 = scmp.eq.s32.totalorder %s15, 0
      %p63 = por %p61, %p62
      %p64 = scmp.ne.s32.totalorder %s56, %s58
      %p65 = scmp.eq.s32.totalorder %s20, 7
      %p66 = por %p64, %p65
      %p67 = scmp.ne.s32.totalorder %s58, %s59
      %p68 = scmp.eq.s32.totalorder %s20, 0
      %p69 = por %p67, %p68
      %p70 = scmp.ne.s32.totalorder %s58, %s59
      %p71 = scmp.eq.s32.totalorder %s21, 7
      %p72 = por %p70, %p71
      %p74 = scmp.ne.s32.totalorder %s59, %s73
      %p75 = scmp.eq.s32.totalorder %s21, 0
      %p76 = por %p74, %p75
      %s77 = ssub.s32 %s22, %s34
      %s78 = ssub.s32 %s23, %s30
      %s79 = sor.u32 %s77, %s78
      %p80 = scmp.eq.s32.totalorder %s79, 0
      %s82 = sadd.s32 %s81, 1
      %s83 = scalar_select %p80, %s81, %s82
      %p86 = pneg %p80
      %p87 = scmp.eq.s32.totalorder %s15, 7
      %p88 = por %p86, %p87
      %p89 = scmp.ne.s32.totalorder %s81, %s84
      %p90 = scmp.eq.s32.totalorder %s15, 0
      %p91 = por %p89, %p90
      %p92 = scmp.ne.s32.totalorder %s81, %s84
      %p93 = scmp.eq.s32.totalorder %s20, 7
      %p94 = por %p92, %p93
      %p95 = scmp.ne.s32.totalorder %s84, %s85
      %p96 = scmp.eq.s32.totalorder %s20, 0
      %p97 = por %p95, %p96
      %p98 = scmp.ne.s32.totalorder %s84, %s85
      %p99 = scmp.eq.s32.totalorder %s21, 7
      %p100 = por %p98, %p99
      %p102 = scmp.ne.s32.totalorder %s85, %s101
      %p103 = scmp.eq.s32.totalorder %s21, 0
      %p104 = por %p102, %p103
      %s105 = ssub.s32 %s22, %s34
      %s106 = ssub.s32 %s23, %s30
      %s107 = sor.u32 %s105, %s106
      %p108 = scmp.eq.s32.totalorder %s107, 0
      %s110 = sadd.s32 %s109, 1
      %s111 = scalar_select %p108, %s109, %s110
      %p114 = pneg %p108
      %p115 = scmp.eq.s32.totalorder %s15, 7
      %p116 = por %p114, %p115
      %p117 = scmp.ne.s32.totalorder %s109, %s112
      %p118 = scmp.eq.s32.totalorder %s15, 0
      %p119 = por %p117, %p118
      %p120 = scmp.ne.s32.totalorder %s109, %s112
      %p121 = scmp.eq.s32.totalorder %s20, 7
      %p122 = por %p120, %p121
      %p123 = scmp.ne.s32.totalorder %s112, %s113
      %p124 = scmp.eq.s32.totalorder %s20, 0
      %p125 = por %p123, %p124
      %p126 = scmp.ne.s32.totalorder %s112, %s113
      %p127 = scmp.eq.s32.totalorder %s21, 7
      %p128 = por %p126, %p127
      %p130 = scmp.ne.s32.totalorder %s113, %s129
      %p131 = scmp.eq.s32.totalorder %s21, 0
      %p132 = por %p130, %p131
      %p133 = scmp.le.s32.totalorder 1, %s15
      %p134 = scmp.lt.s32.totalorder %s15, 9
      %p135 = pnand %p133, %p134
      %p136 = pneg %p135
      // Predicated region
      $region9: #{tpu_custom_call.1} parent=5 // pred_check
        _
      $region10: #{tpu_custom_call.1} parent=5 // pred_check_branch
        %138 = sbr.rel (%p135) target = $region12
      $region11: #{tpu_custom_call.1} parent=5 // pred_region
        %s139 = ssub.s32 %s15, 1
        // Predicated region
        $region13: #{tpu_custom_call.1} parent=11 // pred_check
          %p140 = pneg %p48
        $region14: #{tpu_custom_call.1} parent=11 // pred_check_branch
          %142 = sbr.rel (%p140) target = $region16
        $region15: #{tpu_custom_call.1} parent=11 // pred_region
          _
        $region16: #{tpu_custom_call.1} parent=11 // pred_fallthru
          _
        // Predicated region
        $region17: #{tpu_custom_call.1} parent=11 // pred_check
          %p143 = pneg %p69
        $region18: #{tpu_custom_call.1} parent=11 // pred_check_branch
          %145 = sbr.rel (%p143) target = $region20
        $region19: #{tpu_custom_call.1} parent=11 // pred_region
          _
        $region20: #{tpu_custom_call.1} parent=11 // pred_fallthru
          _
      $region12: #{tpu_custom_call.1} parent=5 // pred_fallthru
        _
      %p146 = scmp.lt.s32.totalorder %s15, 8
      // Predicated region
      $region21: #{tpu_custom_call.1} parent=5 // pred_check
        %p147 = pneg %p146
      $region22: #{tpu_custom_call.1} parent=5 // pred_check_branch
        %149 = sbr.rel (%p147) target = $region24
      $region23: #{tpu_custom_call.1} parent=5 // pred_region
        // Predicated region
        $region25: #{tpu_custom_call.1} parent=23 // pred_check
          %p150 = pneg %p91
        $region26: #{tpu_custom_call.1} parent=23 // pred_check_branch
          %152 = sbr.rel (%p150) target = $region28
        $region27: #{tpu_custom_call.1} parent=23 // pred_region
          %s153 = sand.u32 %s81, 1
          %s154 = scalar_lea.sflag [#allocation3], %s153
          %s155 = sand.u32 %s81, 1
          %s156 = smul.addr %s155, 32
          %s157 = scalar_lea.vmem [#allocation2], %s156
          %s158 = smul.u32 2, %s23
          %s160 = ssub.s32 512, 512
          %161 = vsyncadd %s154, %s160
          %s162 = smul.addr %s22, 8
          %s163 = sadd.s32 %s158, %s162
          %s164 = smul.addr %s163, 64
          %s165 = scalar_lea.hbm %s2, %s164
          %s166 = sshll.u32 %s157, 4
          %s167 = int_to_ptr.vmem [resolvable:$true] %s166
          %172 = dma.hbm_to_vmem [thread:$0]  %s165, 512, %s167, %s154, 128, 128, 8
        $region28: #{tpu_custom_call.1} parent=23 // pred_fallthru
          _
      $region24: #{tpu_custom_call.1} parent=5 // pred_fallthru
        _
      %p173 = scmp.le.s32.totalorder 1, %s15
      %p174 = scmp.lt.s32.totalorder %s15, 9
      %p175 = pnand %p173, %p174
      %p176 = pneg %p175
      // Predicated region
      $region29: #{tpu_custom_call.1} parent=5 // pred_check
        _
      $region30: #{tpu_custom_call.1} parent=5 // pred_check_branch
        %178 = sbr.rel (%p175) target = $region32
      $region31: #{tpu_custom_call.1} parent=5 // pred_region
        %s179 = ssub.s32 %s15, 1
        %s180 = sand.u32 %s84, 1
        %s181 = scalar_lea.sflag [#allocation3], %s180
        %s182 = sand.u32 %s84, 1
        %s183 = smul.addr %s182, 32
        %s184 = scalar_lea.vmem [#allocation2], %s183
        // Predicated region
        $region33: #{tpu_custom_call.1} parent=31 // pred_check
          %p185 = pneg %p97
        $region34: #{tpu_custom_call.1} parent=31 // pred_check_branch
          %187 = sbr.rel (%p185) target = $region36
        $region35: #{tpu_custom_call.1} parent=31 // pred_region
          %188 = dma.done %s181, 512
        $region36: #{tpu_custom_call.1} parent=31 // pred_fallthru
          _
        %p189 = pneg %p48
        %p190 = pneg %p45
        %p191 = pneg %p69
        %p192 = pneg %p66
        %s193 = sand.u32 %s84, 1
        %s194 = scalar_lea.sflag [#allocation3], %s193
        %s195 = sand.u32 %s84, 1
        %s196 = smul.addr %s195, 32
        %s197 = scalar_lea.vmem [#allocation2], %s196
        %p198 = pneg %p97
        %p199 = pneg %p94
        %p200 = pneg %p125
        %p201 = pneg %p122
        %s202 = sand.u32 %s112, 1
        %s203 = scalar_lea.sflag [#allocation4], %s202
        %s204 = sand.u32 %s112, 1
        %s205 = smul.addr %s204, 8
        %s206 = scalar_lea.vmem [#allocation5], %s205
        %s207 = smul.u32 2, %s25
        %s208 = smul.u32 2, %s25
        %v210 = vld [vmem:[%s0] sm:$0xf]
        %v211 = vld [vmem:[%s184] sm:$0xff]
        %v212 = vld [vmem:[%s184 + $0x8] sm:$0xff]
        %v213 = vld [vmem:[%s184 + $0x10] sm:$0xff]
        %v214 = vld [vmem:[%s184 + $0x18] sm:$0xff]
        %v215 = vld [vmem:[%s1] sm:$0xff]
        %217 = vset.pattern.permute.xlu0 0
        %218 = vperm.xlu0 %217, %v215
        %v219 = vpop.permute.xlu0 %218
        %v225 = vunpack.c.l.b16 %v211
        %v226 = vunpack.c.h.b16 %v211
        %v227 = vunpack.c.l.b16 %v212
        %v228 = vunpack.c.h.b16 %v212
        %v229 = vunpack.c.l.b16 %v213
        %v230 = vunpack.c.h.b16 %v213
        %v231 = vunpack.c.l.b16 %v214
        %v232 = vunpack.c.h.b16 %v214
        %v233 = vpack.c.b16 %v227, %v225
        %v234 = vpack.c.b16 %v228, %v226
        %v235 = vpack.c.b16 %v231, %v229
        %v236 = vpack.c.b16 %v232, %v230
        %vm241 = vcmask 261120
        %v243 = vsel %vm241, %v210, 0
        %245 = vmatprep.subr.bf16.mxu0 0
        %246 = vmatpush1.bf16.msra.mxu0 0
        %247 = vmatprep.subr.bf16.mxu0 0
        %248 = vmatpush1.bf16.msra.mxu0 0
        %249 = vmatprep.subr.bf16.mxu0 0
        %250 = vmatpush1.bf16.msra.mxu0 0
        %251 = vmatprep.subr.bf16.mxu0 0
        %252 = vmatpush1.bf16.msra.mxu0 0
        %253 = vmatprep.subr.bf16.mxu0 0
        %254 = vmatpush1.bf16.msra.mxu0 0
        %255 = vmatprep.subr.bf16.mxu0 0
        %256 = vmatpush1.bf16.msra.mxu0 0
        %257 = vmatprep.subr.bf16.mxu0 %v236
        %258 = vmatpush1.bf16.msra.mxu0 %v235
        %259 = vmatprep.subr.bf16.mxu0 %v234
        %260 = vmatpush1.bf16.msra.mxu0 %v233
        %261 = vmatprep.subr.bf16.mxu0 0
        %262 = vmatpush2.bf16.msra.mxu0 0
        %263 = vmatprep.subr.bf16.mxu0 0
        %264 = vmatpush2.bf16.msra.mxu0 0
        %265 = vmatprep.subr.bf16.mxu0 0
        %266 = vmatpush2.bf16.msra.mxu0 0
        %267 = vmatprep.subr.bf16.mxu0 0
        %268 = vmatpush2.bf16.msra.mxu0 0
        %269 = vmatprep.subr.bf16.mxu0 0
        %270 = vmatpush2.bf16.msra.mxu0 0
        %271 = vmatprep.subr.bf16.mxu0 0
        %272 = vmatpush2.bf16.msra.mxu0 0
        %273 = vmatprep.subr.bf16.mxu0 0
        %274 = vmatpush2.bf16.msra.mxu0 0
        %275 = vmatprep.subr.bf16.mxu0 0
        %276 = vmatpush2.bf16.msra.mxu0 0
        %277 = vmatprep.mubr.bf16.mxu0 0
        %278 = vmatmul.mubr.bf16.gmra.mxu0 %v243
        %v279 = vpop.f32.mrf.mxu0
        %v280 = vadd.f32 %v219, %v279
        %v281 = vpop.f32.mrf.mxu0
        %v282 = vadd.f32 %v219, %v281
        %v283 = vpop.f32.mrf.mxu0
        %v284 = vpop.f32.mrf.mxu0
        %285 = vdwg.mxu0
        %v286 = vmax.f32 %v280, 0.0
        %v287 = vmax.f32 %v282, 0.0
        %v288 = vpack.c.bf16 %v286, %v286
        %v289 = vpack.c.bf16 %v287, %v287
        %v292 = vunpack.c.l.b16 %v288
        %v293 = vunpack.c.l.b16 %v289
        %v294 = vpack.c.b16 %v293, %v292
        %296 = vst [vmem:[%s206] sm:$0xff] %v294
        %s297 = sand.u32 %s112, 1
        %s298 = scalar_lea.sflag [#allocation4], %s297
        %s299 = sand.u32 %s112, 1
        %s300 = smul.addr %s299, 8
        %s301 = scalar_lea.vmem [#allocation5], %s300
        // Predicated region
        $region37: #{tpu_custom_call.1} parent=31 // pred_check
          %p302 = pneg %p122
        $region38: #{tpu_custom_call.1} parent=31 // pred_check_branch
          %304 = sbr.rel (%p302) target = $region40
        $region39: #{tpu_custom_call.1} parent=31 // pred_region
          %s305 = smul.u32 2, %s25
          %s307 = ssub.s32 128, 128
          %308 = vsyncadd %s298, %s307
          %s309 = smul.addr %s24, 2
          %s310 = sadd.s32 %s305, %s309
          %s311 = smul.addr %s310, 64
          %s312 = scalar_lea.hbm %s3, %s311
          %s314 = sshll.u32 %s301, 4
          %s315 = int_to_ptr.vmem [resolvable:$true] %s314
          %317 = dma.vmem_to_hbm [thread:$0]  %s315, 128, %s312, %s298
        $region40: #{tpu_custom_call.1} parent=31 // pred_fallthru
          _
      $region32: #{tpu_custom_call.1} parent=5 // pred_fallthru
        _
      %p318 = scmp.le.s32.totalorder 2, %s15
      // Predicated region
      $region41: #{tpu_custom_call.1} parent=5 // pred_check
        %p319 = pneg %p318
      $region42: #{tpu_custom_call.1} parent=5 // pred_check_branch
        %321 = sbr.rel (%p319) target = $region44
      $region43: #{tpu_custom_call.1} parent=5 // pred_region
        %s322 = ssub.s32 %s15, 2
        // Predicated region
        $region45: #{tpu_custom_call.1} parent=43 // pred_check
          %p323 = pneg %p128
        $region46: #{tpu_custom_call.1} parent=43 // pred_check_branch
          %325 = sbr.rel (%p323) target = $region48
        $region47: #{tpu_custom_call.1} parent=43 // pred_region
          %s326 = sand.u32 %s113, 1
          %s327 = scalar_lea.sflag [#allocation4], %s326
          %s328 = sand.u32 %s113, 1
          %s329 = smul.addr %s328, 8
          %s330 = scalar_lea.vmem [#allocation5], %s329
          %331 = dma.done %s327, 128
        $region48: #{tpu_custom_call.1} parent=43 // pred_fallthru
          _
      $region44: #{tpu_custom_call.1} parent=5 // pred_fallthru
        _
    $region6: #{tpu_custom_call.1} parent=1 // loop_footer
      %s19 = sadd.s32 1, %s15
    $region7: #{tpu_custom_call.1} parent=1 // loop_footer_branch
      %14 = sbr.rel target = $region3
    $region8: #{tpu_custom_call.1} parent=1 // loop_exit
      _
    %332 = vsyncpa [#allocation3], 1
    %s333 = scalar_lea.sflag [#allocation3], 1
    %334 = vsyncpa %s333, 1
    %335 = vsyncpa [#allocation4], 1
    %s336 = scalar_lea.sflag [#allocation4], 1
    %337 = vsyncpa %s336, 1

</llo_original>
